<compile_context>
chip_gen: v7x
topology: tpu7x:2x2x1
jax: 0.10.0
libtpu: 0.0.40
codegen_flags: <defaults>
</compile_context>

<pallas_src>
import functools
from typing import NamedTuple, Tuple

import jax
import jax.numpy as jnp
from jax.experimental import pallas as pl
from jax.experimental.pallas import tpu as pltpu

_LANES = 128
_NEG_BIG = -1e30

_HEAD_HIDDEN = ("hidden_type0", "hidden_type1",
                "hidden_move0", "hidden_move1", "hidden_move2", "hidden_move3")
_HEAD_OUT = ("output_type0", "output_type1",
             "output_move0", "output_move1", "output_move2", "output_move3")


def _round_up(x, m):
    return ((x + m - 1) // m) * m


class ActorLayout(NamedTuple):
    """Static (hashable) description of the packed parameter buffer."""
    d_in: int
    c: int                         # lane width of every packed block (=128)
    nhh: int                       # 128-lane chunks of the fused 6*h2 width
    bias_rows: int
    bias_off: int
    w_in_off: int
    w_h0_off: int
    whh_offs: Tuple[int, ...]
    wout_offs: Tuple[int, ...]
    s_off: int
    total_rows: int
    total_out: int
    segments: Tuple[Tuple[int, int], ...]


# ----------------------------------------------------------------------------
# Kernel
# ----------------------------------------------------------------------------
def actor_kernel(x_ref, p_ref, out_ref, *, lay: ActorLayout):
    C = lay.c
    x = x_ref[...]                                              # (Bp, d_in)

    # All biases: one aligned (bias_rows, 128) load, rows sliced as values.
    biases = p_ref[lay.bias_off:lay.bias_off + lay.bias_rows, :]
    b = lambda i: biases[i:i + 1, :]                            # (1, 128)

    # Shared trunk (hidden widths zero-padded to 128 lanes inside the pack).
    w_in = p_ref[lay.w_in_off:lay.w_in_off + lay.d_in, :]       # (d_in, 128)
    h = jnp.maximum(
        jnp.dot(x, w_in, preferred_element_type=jnp.float32) + b(0), 0.0)
    w_h0 = p_ref[lay.w_h0_off:lay.w_h0_off + C, :]              # (128, 128)
    h = jnp.maximum(
        jnp.dot(h, w_h0, preferred_element_type=jnp.float32) + b(1), 0.0)

    # 6 head-hidden layers + 6 block-diagonal head-output layers, fused and
    # processed as nhh 128-lane chunks (2 chunks for 6*h2 = 192).
    acc = None
    for k in range(lay.nhh):
        w_hh = p_ref[lay.whh_offs[k]:lay.whh_offs[k] + C, :]    # (128, 128)
        hh = jnp.maximum(
            jnp.dot(h, w_hh, preferred_element_type=jnp.float32) + b(2 + k),
            0.0)
        w_out = p_ref[lay.wout_offs[k]:lay.wout_offs[k] + C, :]
        part = jnp.dot(hh, w_out, preferred_element_type=jnp.float32)
        acc = part if acc is None else acc + part
    logits = acc + b(2 + lay.nhh)          # padding lanes carry a -1e30 bias

    # Segmented softmax, mask-free:
    #   * global row max (padding lanes can never win: they sit at -1e30)
    #   * exp() makes padding lanes exactly 0
    #   * per-segment sums via ONE MXU matmul against the 0/1 same-segment
    #     matrix S (padding columns of S are all-ones -> positive denominator)
    rowmax = jnp.max(logits, axis=-1, keepdims=True)
    e = jnp.exp(logits - rowmax)
    s_mat = p_ref[lay.s_off:lay.s_off + C, :]                   # (128, 128)
    denom = jnp.dot(e, s_mat, preferred_element_type=jnp.float32)
    # Exact divide (pl.reciprocal(approx=True) would violate 1e-5 row sums).
    out_ref[...] = e / denom


# ----------------------------------------------------------------------------
# Parameter init (PyTorch nn.Linear-like) and ONE-TIME packing
# ----------------------------------------------------------------------------
def init_actor_params(key, input_dim, hidden_dim, output_dim):
    """Weights stored as (in_features, out_features); biases as (1, out)."""
    layer_dims = [
        ("input", input_dim, hidden_dim[0]),
        ("hidden0", hidden_dim[0], hidden_dim[1]),
        ("hidden_type0", hidden_dim[1], hidden_dim[2]),
        ("hidden_type1", hidden_dim[1], hidden_dim[2]),
        ("hidden_move0", hidden_dim[1], hidden_dim[2]),
        ("hidden_move1", hidden_dim[1], hidden_dim[2]),
        ("hidden_move2", hidden_dim[1], hidden_dim[2]),
        ("hidden_move3", hidden_dim[1], hidden_dim[2]),
        ("output_type0", hidden_dim[2], output_dim[0]),
        ("output_type1", hidden_dim[2], output_dim[1]),
        ("output_move0", hidden_dim[2], output_dim[2]),
        ("output_move1", hidden_dim[2], output_dim[3]),
        ("output_move2", hidden_dim[2], output_dim[3]),
        ("output_move3", hidden_dim[2], output_dim[3]),
    ]
    params = {}
    for name, fan_in, fan_out in layer_dims:
        key, kw, kb = jax.random.split(key, 3)
        bound = 1.0 / jnp.sqrt(fan_in)
        w = jax.random.uniform(kw, (fan_in, fan_out), jnp.float32, -bound, bound)
        b = jax.random.uniform(kb, (1, fan_out), jnp.float32, -bound, bound)
        params[name] = (w, b)
    return params


def pack_actor_params(params, hidden_dim, output_dim):
    """Pack all 14 Linear layers + the segment-sum matrix into ONE
    tile-aligned (rows, 128) f32 buffer.  Call once, not per forward."""
    h0, h1, h2 = (int(d) for d in hidden_dim)
    out_dims = (int(output_dim[0]), int(output_dim[1]), int(output_dim[2]),
                int(output_dim[3]), int(output_dim[3]), int(output_dim[3]))
    total_out = sum(out_dims)
    C = _LANES
    assert h0 <= C and h1 <= C and total_out <= C, "packer assumes dims <= 128"

    d_in = int(params["input"][0].shape[0])
    hh_w = len(_HEAD_HIDDEN) * h2                 # fused head-hidden width
    nhh = -(-hh_w // C)                           # number of 128-lane chunks
    hhp = nhh * C
    f32 = jnp.float32

    # Fused head-hidden weights/bias, zero-padded to (C, nhh*C).
    w_hh = jnp.zeros((C, hhp), f32)
    b_hh = jnp.zeros((1, hhp), f32)
    for i, name in enumerate(_HEAD_HIDDEN):
        w, bb = params[name]
        w_hh = w_hh.at[:h1, i * h2:(i + 1) * h2].set(w)
        b_hh = b_hh.at[:, i * h2:(i + 1) * h2].set(bb)

    # Block-diagonal fused head-output weights, bias (pad lanes -> -1e30),
    # and the 0/1 same-segment matrix S (pad columns -> all ones).
    w_out = jnp.zeros((hhp, C), f32)
    b_out = jnp.full((1, C), _NEG_BIG, f32)
    s_mat = jnp.zeros((C, C), f32)
    segments = []
    off = 0
    for i, name in enumerate(_HEAD_OUT):
        w, bb = params[name]
        d = out_dims[i]
        w_out = w_out.at[i * h2:(i + 1) * h2, off:off + d].set(w)
        b_out = b_out.at[:, off:off + d].set(bb)
        s_mat = s_mat.at[off:off + d, off:off + d].set(1.0)
        segments.append((off, d))
        off += d
    s_mat = s_mat.at[:, total_out:].set(1.0)

    # Bias block: one row per bias, padded to a multiple of 8 rows.
    n_bias = 3 + nhh
    bias_rows = _round_up(n_bias, 8)
    bias_blk = jnp.zeros((bias_rows, C), f32)
    bias_blk = bias_blk.at[0, :h0].set(params["input"][1][0])
    bias_blk = bias_blk.at[1, :h1].set(params["hidden0"][1][0])
    for k in range(nhh):
        bias_blk = bias_blk.at[2 + k, :].set(b_hh[0, k * C:(k + 1) * C])
    bias_blk = bias_blk.at[2 + nhh, :].set(b_out[0])

    w_in_blk = jnp.zeros((_round_up(d_in, 8), C), f32)
    w_in_blk = w_in_blk.at[:d_in, :h0].set(params["input"][0])
    w_h0_blk = jnp.zeros((C, C), f32)
    w_h0_blk = w_h0_blk.at[:h0, :h1].set(params["hidden0"][0])

    blocks = [bias_blk, w_in_blk, w_h0_blk]
    blocks += [w_hh[:, k * C:(k + 1) * C] for k in range(nhh)]
    blocks += [w_out[k * C:(k + 1) * C, :] for k in range(nhh)]
    blocks += [s_mat]

    offs, row = [], 0
    for blk in blocks:
        offs.append(row)
        row += int(blk.shape[0])
    packed = jnp.concatenate(blocks, axis=0)      # (total_rows, 128) ~0.4 MiB

    lay = ActorLayout(
        d_in=d_in, c=C, nhh=nhh,
        bias_rows=bias_rows, bias_off=offs[0],
        w_in_off=offs[1], w_h0_off=offs[2],
        whh_offs=tuple(offs[3:3 + nhh]),
        wout_offs=tuple(offs[3 + nhh:3 + 2 * nhh]),
        s_off=offs[3 + 2 * nhh],
        total_rows=row, total_out=total_out,
        segments=tuple(segments))
    return packed, lay


# ----------------------------------------------------------------------------
# Forward wrapper
# ----------------------------------------------------------------------------
@functools.partial(jax.jit, static_argnames=("lay",))
def actor_forward(x, packed, lay: ActorLayout):
    B, d_in = x.shape
    assert d_in == lay.d_in
    Bp = _round_up(B, 8)              # full f32 sublanes -> unmasked MXU / vst
    if Bp != B:
        x = jnp.pad(x, ((0, Bp - B), (0, 0)))
    C = lay.c

    flops = 2 * Bp * C * (lay.d_in + C * (2 + 2 * lay.nhh))
    bytes_accessed = 4 * (Bp * lay.d_in + packed.size + Bp * C)

    vmem = pl.BlockSpec(memory_space=pltpu.MemorySpace.VMEM)
    # grid=() is intentional at this size (launch/DMA-latency bound).  For
    # large rollout batches, add a leading batch grid axis with constant
    # index_maps for the packed params and dimension_semantics=("parallel",)
    # to shard across v7x's two TensorCores.
    probs_flat = pl.pallas_call(
        functools.partial(actor_kernel, lay=lay),
        out_shape=jax.ShapeDtypeStruct((Bp, C), jnp.float32),
        in_specs=[vmem, vmem],
        out_specs=vmem,
        compiler_params=pltpu.CompilerParams(
            vmem_limit_bytes=2 * 1024 * 1024),
        cost_estimate=pl.CostEstimate(
            flops=flops, transcendentals=Bp * C,
            bytes_accessed=bytes_accessed),
    )(x, packed)
    # Flat (Bp, 128) probabilities; padded lanes are exactly 0, padded batch
    # rows are ignorable.  Per-head slicing is left to the consumer so the
    # jitted hot path does not materialize 6 tiny copies.
    return probs_flat


def split_heads(probs_flat, batch, lay: ActorLayout):
    """Recover the 6 per-head Categorical probability tensors (consumer /
    test side; deliberately outside the jitted hot path)."""
    return tuple(probs_flat[:batch, off:off + d] for off, d in lay.segments)


# ----------------------------------------------------------------------------
# Pure-JAX reference (uses the original, unpacked params)
# ----------------------------------------------------------------------------
def actor_forward_ref(x, params):
    def lin(h, name):
        w, b = params[name]
        return h @ w + b

    h = jax.nn.relu(lin(x, "input"))
    h = jax.nn.relu(lin(h, "hidden0"))
    outs = []
    for hname, oname in zip(_HEAD_HIDDEN, _HEAD_OUT):
        hh = jax.nn.relu(lin(h, hname))
        outs.append(jax.nn.softmax(lin(hh, oname), axis=-1))
    return tuple(outs)


# ----------------------------------------------------------------------------
if __name__ == "__main__":
    key = jax.random.PRNGKey(0)

    # small shapes consistent with the module's __init__ signature
    batch = 2
    input_dim = 32
    hidden_dim = (32, 32, 32)
    output_dim = (6, 6, 4, 4)

    key, kx, kp = jax.random.split(key, 3)
    x = jax.random.normal(kx, (batch, input_dim), jnp.float32)
    params = init_actor_params(kp, input_dim, hidden_dim, output_dim)

    # one-time packing (do NOT repeat per call)
    packed, lay = pack_actor_params(params, hidden_dim, output_dim)

    probs_flat = actor_forward(x, packed, lay)
    probs_flat = jax.block_until_ready(probs_flat)

    # per-head slicing + verification against the pure-JAX reference
    # TODO(synk): torch.distributions.Categorical objects are represented by
    # their probability tensors; sampling/log_prob is left to the caller.
    probs = split_heads(probs_flat, batch, lay)
    ref = actor_forward_ref(x, params)
    assert len(probs) == 6
    for p, r in zip(probs, ref):
        assert p.shape == r.shape, (p.shape, r.shape)
        assert jnp.allclose(p, r, atol=1e-5), (p, r)
        # each row of a Categorical's probs must sum to 1
        assert jnp.allclose(jnp.sum(p, axis=-1), 1.0, atol=1e-5)

    print("KERNEL_OK")
</pallas_src>

<mosaic_0001>
module attributes {stable_mosaic.version = 11 : i64} {
  func.func @actor_kernel(%arg0: memref<8x32xf32, #tpu.memory_space<vmem>>, %arg1: memref<808x128xf32, #tpu.memory_space<vmem>>, %arg2: memref<8x128xf32, #tpu.memory_space<vmem>>) attributes {dimension_semantics = [], scalar_prefetch = 0 : i64, scratch_operands = 0 : i64, tpu.core_type = #tpu.core_type<tc>} {
    %c0 = arith.constant 0 : index
    %c0_0 = arith.constant 0 : index
    %0 = vector.load %arg0[%c0, %c0_0] : memref<8x32xf32, #tpu.memory_space<vmem>>, vector<8x32xf32>
    %c0_1 = arith.constant 0 : index
    %c0_2 = arith.constant 0 : index
    %1 = vector.load %arg1[%c0_1, %c0_2] : memref<808x128xf32, #tpu.memory_space<vmem>>, vector<8x128xf32>
    %c8 = arith.constant 8 : index
    %c0_3 = arith.constant 0 : index
    %2 = vector.load %arg1[%c8, %c0_3] : memref<808x128xf32, #tpu.memory_space<vmem>>, vector<32x128xf32>
    %cst = arith.constant dense<0.000000e+00> : vector<8x128xf32>
    %3 = tpu.matmul %0, %2, %cst {dimension_numbers = #tpu.dot_dimension_numbers<[1], [0], [0], [1], [0, 0, 1, 1], [], []>} : vector<8x32xf32>, vector<32x128xf32>, vector<8x128xf32> -> vector<8x128xf32>
    %4 = vector.extract_strided_slice %1 {offsets = [0, 0], sizes = [1, 128], strides = [1, 1]} : vector<8x128xf32> to vector<1x128xf32>
    %5 = vector.broadcast %4 : vector<1x128xf32> to vector<8x128xf32>
    %6 = arith.addf %3, %5 : vector<8x128xf32>
    %cst_4 = arith.constant 0.000000e+00 : f32
    %7 = vector.broadcast %cst_4 : f32 to vector<8x128xf32>
    %8 = arith.maximumf %6, %7 : vector<8x128xf32>
    %c40 = arith.constant 40 : index
    %c0_5 = arith.constant 0 : index
    %9 = vector.load %arg1[%c40, %c0_5] : memref<808x128xf32, #tpu.memory_space<vmem>>, vector<128x128xf32>
    %cst_6 = arith.constant dense<0.000000e+00> : vector<8x128xf32>
    %10 = tpu.matmul %8, %9, %cst_6 {dimension_numbers = #tpu.dot_dimension_numbers<[1], [0], [0], [1], [0, 0, 1, 1], [], []>} : vector<8x128xf32>, vector<128x128xf32>, vector<8x128xf32> -> vector<8x128xf32>
    %11 = vector.extract_strided_slice %1 {offsets = [1, 0], sizes = [1, 128], strides = [1, 1]} : vector<8x128xf32> to vector<1x128xf32>
    %12 = vector.broadcast %11 : vector<1x128xf32> to vector<8x128xf32>
    %13 = arith.addf %10, %12 : vector<8x128xf32>
    %cst_7 = arith.constant 0.000000e+00 : f32
    %14 = vector.broadcast %cst_7 : f32 to vector<8x128xf32>
    %15 = arith.maximumf %13, %14 : vector<8x128xf32>
    %c168 = arith.constant 168 : index
    %c0_8 = arith.constant 0 : index
    %16 = vector.load %arg1[%c168, %c0_8] : memref<808x128xf32, #tpu.memory_space<vmem>>, vector<128x128xf32>
    %cst_9 = arith.constant dense<0.000000e+00> : vector<8x128xf32>
    %17 = tpu.matmul %15, %16, %cst_9 {dimension_numbers = #tpu.dot_dimension_numbers<[1], [0], [0], [1], [0, 0, 1, 1], [], []>} : vector<8x128xf32>, vector<128x128xf32>, vector<8x128xf32> -> vector<8x128xf32>
    %18 = vector.extract_strided_slice %1 {offsets = [2, 0], sizes = [1, 128], strides = [1, 1]} : vector<8x128xf32> to vector<1x128xf32>
    %19 = vector.broadcast %18 : vector<1x128xf32> to vector<8x128xf32>
    %20 = arith.addf %17, %19 : vector<8x128xf32>
    %cst_10 = arith.constant 0.000000e+00 : f32
    %21 = vector.broadcast %cst_10 : f32 to vector<8x128xf32>
    %22 = arith.maximumf %20, %21 : vector<8x128xf32>
    %c424 = arith.constant 424 : index
    %c0_11 = arith.constant 0 : index
    %23 = vector.load %arg1[%c424, %c0_11] : memref<808x128xf32, #tpu.memory_space<vmem>>, vector<128x128xf32>
    %cst_12 = arith.constant dense<0.000000e+00> : vector<8x128xf32>
    %24 = tpu.matmul %22, %23, %cst_12 {dimension_numbers = #tpu.dot_dimension_numbers<[1], [0], [0], [1], [0, 0, 1, 1], [], []>} : vector<8x128xf32>, vector<128x128xf32>, vector<8x128xf32> -> vector<8x128xf32>
    %c296 = arith.constant 296 : index
    %c0_13 = arith.constant 0 : index
    %25 = vector.load %arg1[%c296, %c0_13] : memref<808x128xf32, #tpu.memory_space<vmem>>, vector<128x128xf32>
    %cst_14 = arith.constant dense<0.000000e+00> : vector<8x128xf32>
    %26 = tpu.matmul %15, %25, %cst_14 {dimension_numbers = #tpu.dot_dimension_numbers<[1], [0], [0], [1], [0, 0, 1, 1], [], []>} : vector<8x128xf32>, vector<128x128xf32>, vector<8x128xf32> -> vector<8x128xf32>
    %27 = vector.extract_strided_slice %1 {offsets = [3, 0], sizes = [1, 128], strides = [1, 1]} : vector<8x128xf32> to vector<1x128xf32>
    %28 = vector.broadcast %27 : vector<1x128xf32> to vector<8x128xf32>
    %29 = arith.addf %26, %28 : vector<8x128xf32>
    %cst_15 = arith.constant 0.000000e+00 : f32
    %30 = vector.broadcast %cst_15 : f32 to vector<8x128xf32>
    %31 = arith.maximumf %29, %30 : vector<8x128xf32>
    %c552 = arith.constant 552 : index
    %c0_16 = arith.constant 0 : index
    %32 = vector.load %arg1[%c552, %c0_16] : memref<808x128xf32, #tpu.memory_space<vmem>>, vector<128x128xf32>
    %cst_17 = arith.constant dense<0.000000e+00> : vector<8x128xf32>
    %33 = tpu.matmul %31, %32, %cst_17 {dimension_numbers = #tpu.dot_dimension_numbers<[1], [0], [0], [1], [0, 0, 1, 1], [], []>} : vector<8x128xf32>, vector<128x128xf32>, vector<8x128xf32> -> vector<8x128xf32>
    %34 = arith.addf %24, %33 : vector<8x128xf32>
    %35 = vector.extract_strided_slice %1 {offsets = [4, 0], sizes = [1, 128], strides = [1, 1]} : vector<8x128xf32> to vector<1x128xf32>
    %36 = vector.broadcast %35 : vector<1x128xf32> to vector<8x128xf32>
    %37 = arith.addf %34, %36 : vector<8x128xf32>
    %cst_18 = arith.constant dense<0xFF800000> : vector<8xf32>
    %38 = vector.multi_reduction <maximumf>, %37, %cst_18 [1] : vector<8x128xf32> to vector<8xf32>
    %39 = vector.shape_cast %38 : vector<8xf32> to vector<8x1xf32>
    %40 = vector.broadcast %39 : vector<8x1xf32> to vector<8x128xf32>
    %41 = arith.subf %37, %40 : vector<8x128xf32>
    %42 = math.exp %41 : vector<8x128xf32>
    %c680 = arith.constant 680 : index
    %c0_19 = arith.constant 0 : index
    %43 = vector.load %arg1[%c680, %c0_19] : memref<808x128xf32, #tpu.memory_space<vmem>>, vector<128x128xf32>
    %cst_20 = arith.constant dense<0.000000e+00> : vector<8x128xf32>
    %44 = tpu.matmul %42, %43, %cst_20 {dimension_numbers = #tpu.dot_dimension_numbers<[1], [0], [0], [1], [0, 0, 1, 1], [], []>} : vector<8x128xf32>, vector<128x128xf32>, vector<8x128xf32> -> vector<8x128xf32>
    %45 = arith.divf %42, %44 : vector<8x128xf32>
    %c0_21 = arith.constant 0 : index
    %c0_22 = arith.constant 0 : index
    %46 = vector.load %arg2[%c0_21, %c0_22] : memref<8x128xf32, #tpu.memory_space<vmem>>, vector<8x128xf32>
    tpu.vector_store %arg2[%c0_21, %c0_22], %45 {strides = array<i32>} : memref<8x128xf32, #tpu.memory_space<vmem>>, vector<8x128xf32>,
    return
  }
}

</mosaic_0001>

<llo_original>
// kernel: actor_forward.1
$region0: #{actor_forward.1}
  #allocation0 [shape = 'u32[]', space=smem, size = 0x4, offset = 0x4, fixed_abs, tag = 'smem constant byte address 0x4 - core index']
  #allocation1 [shape = 'u32[144,128]{1,0:T(1,128)}', space=vmem, size = 0x12000, scoped, tag = 'internal scratch']
  %s0 = inlined_call_operand.vmem [shape: f32[8,32], index: 0, kind: input, shape index: {}]
  %s1 = inlined_call_operand.hbm [shape: f32[808,128], index: 1, kind: input, shape index: {}]
  %s2 = inlined_call_operand.hbm [shape: f32[8,128], index: 2, kind: output, shape index: {}]
  %s3 = sld [smem:[#allocation0]]
  $region22: #{actor_forward.1} parent=0
    _
  %s5 = ssub.s32 1, %s3
  %s6 = scalar_select 0, %s5, %s3
  $region1: #{actor_forward.1} parent=0
    #allocation2 [shape = 'u8[413696]{0}', space=vmem, size = 0x65000, scoped, tag = 'input window, operand 1, single buffered']
    #allocation3 [shape = 's32[1]{0}', space=sflag, size = 0x4, scoped, tag = 'scoped memory for actor_forward.1']
    #allocation4 [shape = 's32[1]{0}', space=sflag, size = 0x4, scoped, tag = 'scoped memory for actor_forward.1']
    #allocation5 [shape = 'u8[4096]{0}', space=vmem, size = 0x1000, scoped, tag = 'output window, operand 0, single buffered']
    %7 = vsyncpa [#allocation3], 0
    %8 = vsyncpa [#allocation4], 0
    // Predicated region
    $region2: #{actor_forward.1} parent=1 // pred_check
      _
    $region3: #{actor_forward.1} parent=1 // pred_check_branch
      %10 = sbr.rel (0) target = $region5
    $region4: #{actor_forward.1} parent=1 // pred_region
      _
    $region5: #{actor_forward.1} parent=1 // pred_fallthru
      _
    // Predicated region
    $region6: #{actor_forward.1} parent=1 // pred_check
      _
    $region7: #{actor_forward.1} parent=1 // pred_check_branch
      %12 = sbr.rel (0) target = $region9
    $region8: #{actor_forward.1} parent=1 // pred_region
      %s14 = ssub.s32 12928, 12928
      %15 = vsyncadd [#allocation3], %s14
      %s16 = sshll.u32 [#allocation2], 4
      %s17 = int_to_ptr.vmem [resolvable:$true] %s16
      %22 = dma.hbm_to_vmem [thread:$0]  %s1, 12928, %s17, [#allocation3], 128, 128, 8
    $region9: #{actor_forward.1} parent=1 // pred_fallthru
      _
    // Predicated region
    $region10: #{actor_forward.1} parent=1 // pred_check
      _
    $region11: #{actor_forward.1} parent=1 // pred_check_branch
      %24 = sbr.rel (0) target = $region13
    $region12: #{actor_forward.1} parent=1 // pred_region
      %25 = dma.done [#allocation3], 12928
    $region13: #{actor_forward.1} parent=1 // pred_fallthru
      _
    %v26 = vld [vmem:[%s0] sm:$0xff]
    %v27 = vld [vmem:[#allocation2] sm:$0xff]
    %v28 = vld [vmem:[#allocation2 + $0x8] sm:$0xff]
    %v29 = vld [vmem:[#allocation2 + $0x10] sm:$0xff]
    %v30 = vld [vmem:[#allocation2 + $0x18] sm:$0xff]
    %v31 = vld [vmem:[#allocation2 + $0x20] sm:$0xff]
    %v32 = vlaneseq
    %v33 = vshrl.u32 %v32, 7
    %v34 = vsub.s32 0, %v33
    %v35 = vrot.slane %v27, %v34
    %vm36 = vcmask 261120
    %v38 = vsel %vm36, %v26, 0
    %40 = vmatprep.subr.mxu0 0.0
    %41 = vmatpush1.msra.mxu0 %v28
    %42 = vmatprep.subr.mxu0 0.0
    %43 = vmatpush1.msra.mxu0 %v29
    %44 = vmatprep.subr.mxu0 0.0
    %45 = vmatpush1.msra.mxu0 %v30
    %46 = vmatprep.subr.mxu0 0.0
    %47 = vmatpush1.msra.mxu0 %v31
    %48 = vmatprep.subr.mxu0 0.0
    %49 = vmatpush1.msra.mxu0 0.0
    %50 = vmatprep.subr.mxu0 0.0
    %51 = vmatpush1.msra.mxu0 0.0
    %52 = vmatprep.subr.mxu0 0.0
    %53 = vmatpush1.msra.mxu0 0.0
    %54 = vmatprep.subr.mxu0 0.0
    %55 = vmatpush1.msra.mxu0 0.0
    %56 = vmatprep.subr.mxu0 0.0
    %57 = vmatpush1.msra.mxu0 0.0
    %58 = vmatprep.subr.mxu0 0.0
    %59 = vmatpush1.msra.mxu0 0.0
    %60 = vmatprep.subr.mxu0 0.0
    %61 = vmatpush1.msra.mxu0 0.0
    %62 = vmatprep.subr.mxu0 0.0
    %63 = vmatpush1.msra.mxu0 0.0
    %64 = vmatprep.subr.mxu0 0.0
    %65 = vmatpush1.msra.mxu0 0.0
    %66 = vmatprep.subr.mxu0 0.0
    %67 = vmatpush1.msra.mxu0 0.0
    %68 = vmatprep.subr.mxu0 0.0
    %69 = vmatpush1.msra.mxu0 0.0
    %70 = vmatprep.subr.mxu0 0.0
    %71 = vmatpush1.msra.mxu0 0.0
    %72 = vmatprep.subr.mxu0 0.0
    %73 = vmatpush1.msra.mxu0 0.0
    %74 = vmatprep.subr.mxu0 0.0
    %75 = vmatpush1.msra.mxu0 0.0
    %76 = vmatprep.subr.mxu0 0.0
    %77 = vmatpush1.msra.mxu0 0.0
    %78 = vmatprep.subr.mxu0 0.0
    %79 = vmatpush1.msra.mxu0 0.0
    %80 = vmatprep.subr.mxu0 0.0
    %81 = vmatpush1.msra.mxu0 0.0
    %82 = vmatprep.subr.mxu0 0.0
    %83 = vmatpush1.msra.mxu0 0.0
    %84 = vmatprep.subr.mxu0 0.0
    %85 = vmatpush1.msra.mxu0 0.0
    %86 = vmatprep.subr.mxu0 0.0
    %87 = vmatpush1.msra.mxu0 0.0
    %88 = vmatprep.subr.mxu0 0.0
    %89 = vmatpush1.msra.mxu0 0.0
    %90 = vmatprep.subr.mxu0 0.0
    %91 = vmatpush1.msra.mxu0 0.0
    %92 = vmatprep.subr.mxu0 0.0
    %93 = vmatpush1.msra.mxu0 0.0
    %94 = vmatprep.subr.mxu0 0.0
    %95 = vmatpush1.msra.mxu0 0.0
    %96 = vmatprep.subr.mxu0 0.0
    %97 = vmatpush1.msra.mxu0 0.0
    %98 = vmatprep.subr.mxu0 0.0
    %99 = vmatpush1.msra.mxu0 0.0
    %100 = vmatprep.subr.mxu0 0.0
    %101 = vmatpush1.msra.mxu0 0.0
    %102 = vmatprep.subr.mxu0 0.0
    %103 = vmatpush1.msra.mxu0 0.0
    %104 = vmatprep.mubr.f32.mxu0 0.0
    %105 = vmatmul.mubr.f32.gmra.mrb[0].mxu0 %v38
    %v106 = vpop.f32.mrb[0].mxu0
    %v107 = vadd.f32 %v35, %v106
    %v108 = vpop.f32.mrb[0].mxu0
    %109 = vdwg.mxu0
    %v110 = vmax.f32 %v107, 0.0
    %v111 = vld [vmem:[#allocation2 + $0x28] sm:$0xff]
    %v112 = vld [vmem:[#allocation2 + $0x30] sm:$0xff]
    %v113 = vld [vmem:[#allocation2 + $0x38] sm:$0xff]
    %v114 = vld [vmem:[#allocation2 + $0x40] sm:$0xff]
    %v115 = vld [vmem:[#allocation2 + $0x48] sm:$0xff]
    %v116 = vld [vmem:[#allocation2 + $0x50] sm:$0xff]
    %v117 = vld [vmem:[#allocation2 + $0x58] sm:$0xff]
    %v118 = vld [vmem:[#allocation2 + $0x60] sm:$0xff]
    %v119 = vld [vmem:[#allocation2 + $0x68] sm:$0xff]
    %v120 = vld [vmem:[#allocation2 + $0x70] sm:$0xff]
    %v121 = vld [vmem:[#allocation2 + $0x78] sm:$0xff]
    %v122 = vld [vmem:[#allocation2 + $0x80] sm:$0xff]
    %v123 = vld [vmem:[#allocation2 + $0x88] sm:$0xff]
    %v124 = vld [vmem:[#allocation2 + $0x90] sm:$0xff]
    %v125 = vld [vmem:[#allocation2 + $0x98] sm:$0xff]
    %v126 = vld [vmem:[#allocation2 + $0xa0] sm:$0xff]
    %v127 = vlaneseq
    %v128 = vshrl.u32 %v127, 7
    %v129 = vsub.s32 1, %v128
    %v130 = vrot.slane %v27, %v129
    %131 = vmatprep.subr.mxu0 0.0
    %132 = vmatpush1.msra.mxu0 %v111
    %133 = vmatprep.subr.mxu0 0.0
    %134 = vmatpush1.msra.mxu0 %v112
    %135 = vmatprep.subr.mxu0 0.0
    %136 = vmatpush1.msra.mxu0 %v113
    %137 = vmatprep.subr.mxu0 0.0
    %138 = vmatpush1.msra.mxu0 %v114
    %139 = vmatprep.subr.mxu0 0.0
    %140 = vmatpush1.msra.mxu0 %v115
    %141 = vmatprep.subr.mxu0 0.0
    %142 = vmatpush1.msra.mxu0 %v116
    %143 = vmatprep.subr.mxu0 0.0
    %144 = vmatpush1.msra.mxu0 %v117
    %145 = vmatprep.subr.mxu0 0.0
    %146 = vmatpush1.msra.mxu0 %v118
    %147 = vmatprep.subr.mxu0 0.0
    %148 = vmatpush1.msra.mxu0 %v119
    %149 = vmatprep.subr.mxu0 0.0
    %150 = vmatpush1.msra.mxu0 %v120
    %151 = vmatprep.subr.mxu0 0.0
    %152 = vmatpush1.msra.mxu0 %v121
    %153 = vmatprep.subr.mxu0 0.0
    %154 = vmatpush1.msra.mxu0 %v122
    %155 = vmatprep.subr.mxu0 0.0
    %156 = vmatpush1.msra.mxu0 %v123
    %157 = vmatprep.subr.mxu0 0.0
    %158 = vmatpush1.msra.mxu0 %v124
    %159 = vmatprep.subr.mxu0 0.0
    %160 = vmatpush1.msra.mxu0 %v125
    %161 = vmatprep.subr.mxu0 0.0
    %162 = vmatpush1.msra.mxu0 %v126
    %163 = vmatprep.subr.mxu0 0.0
    %164 = vmatpush1.msra.mxu0 0.0
    %165 = vmatprep.subr.mxu0 0.0
    %166 = vmatpush1.msra.mxu0 0.0
    %167 = vmatprep.subr.mxu0 0.0
    %168 = vmatpush1.msra.mxu0 0.0
    %169 = vmatprep.subr.mxu0 0.0
    %170 = vmatpush1.msra.mxu0 0.0
    %171 = vmatprep.subr.mxu0 0.0
    %172 = vmatpush1.msra.mxu0 0.0
    %173 = vmatprep.subr.mxu0 0.0
    %174 = vmatpush1.msra.mxu0 0.0
    %175 = vmatprep.subr.mxu0 0.0
    %176 = vmatpush1.msra.mxu0 0.0
    %177 = vmatprep.subr.mxu0 0.0
    %178 = vmatpush1.msra.mxu0 0.0
    %179 = vmatprep.subr.mxu0 0.0
    %180 = vmatpush1.msra.mxu0 0.0
    %181 = vmatprep.subr.mxu0 0.0
    %182 = vmatpush1.msra.mxu0 0.0
    %183 = vmatprep.subr.mxu0 0.0
    %184 = vmatpush1.msra.mxu0 0.0
    %185 = vmatprep.subr.mxu0 0.0
    %186 = vmatpush1.msra.mxu0 0.0
    %187 = vmatprep.subr.mxu0 0.0
    %188 = vmatpush1.msra.mxu0 0.0
    %189 = vmatprep.subr.mxu0 0.0
    %190 = vmatpush1.msra.mxu0 0.0
    %191 = vmatprep.subr.mxu0 0.0
    %192 = vmatpush1.msra.mxu0 0.0
    %193 = vmatprep.subr.mxu0 0.0
    %194 = vmatpush1.msra.mxu0 0.0
    %195 = vmatprep.mubr.f32.mxu0 0.0
    %196 = vmatmul.mubr.f32.gmra.mrb[0].mxu0 %v110
    %v197 = vpop.f32.mrb[0].mxu0
    %v198 = vadd.f32 %v130, %v197
    %v199 = vpop.f32.mrb[0].mxu0
    %200 = vdwg.mxu0
    %v201 = vmax.f32 %v198, 0.0
    %v202 = vld [vmem:[#allocation2 + $0xa8] sm:$0xff]
    %v203 = vld [vmem:[#allocation2 + $0xb0] sm:$0xff]
    %v204 = vld [vmem:[#allocation2 + $0xb8] sm:$0xff]
    %v205 = vld [vmem:[#allocation2 + $0xc0] sm:$0xff]
    %v206 = vld [vmem:[#allocation2 + $0xc8] sm:$0xff]
    %v207 = vld [vmem:[#allocation2 + $0xd0] sm:$0xff]
    %v208 = vld [vmem:[#allocation2 + $0xd8] sm:$0xff]
    %v209 = vld [vmem:[#allocation2 + $0xe0] sm:$0xff]
    %v210 = vld [vmem:[#allocation2 + $0xe8] sm:$0xff]
    %v211 = vld [vmem:[#allocation2 + $0xf0] sm:$0xff]
    %v212 = vld [vmem:[#allocation2 + $0xf8] sm:$0xff]
    %v213 = vld [vmem:[#allocation2 + $0x100] sm:$0xff]
    %v214 = vld [vmem:[#allocation2 + $0x108] sm:$0xff]
    %v215 = vld [vmem:[#allocation2 + $0x110] sm:$0xff]
    %v216 = vld [vmem:[#allocation2 + $0x118] sm:$0xff]
    %v217 = vld [vmem:[#allocation2 + $0x120] sm:$0xff]
    %v218 = vlaneseq
    %v219 = vshrl.u32 %v218, 7
    %v220 = vsub.s32 2, %v219
    %v221 = vrot.slane %v27, %v220
    %222 = vmatprep.subr.mxu0 0.0
    %223 = vmatpush1.msra.mxu0 %v202
    %224 = vmatprep.subr.mxu0 0.0
    %225 = vmatpush1.msra.mxu0 %v203
    %226 = vmatprep.subr.mxu0 0.0
    %227 = vmatpush1.msra.mxu0 %v204
    %228 = vmatprep.subr.mxu0 0.0
    %229 = vmatpush1.msra.mxu0 %v205
    %230 = vmatprep.subr.mxu0 0.0
    %231 = vmatpush1.msra.mxu0 %v206
    %232 = vmatprep.subr.mxu0 0.0
    %233 = vmatpush1.msra.mxu0 %v207
    %234 = vmatprep.subr.mxu0 0.0
    %235 = vmatpush1.msra.mxu0 %v208
    %236 = vmatprep.subr.mxu0 0.0
    %237 = vmatpush1.msra.mxu0 %v209
    %238 = vmatprep.subr.mxu0 0.0
    %239 = vmatpush1.msra.mxu0 %v210
    %240 = vmatprep.subr.mxu0 0.0
    %241 = vmatpush1.msra.mxu0 %v211
    %242 = vmatprep.subr.mxu0 0.0
    %243 = vmatpush1.msra.mxu0 %v212
    %244 = vmatprep.subr.mxu0 0.0
    %245 = vmatpush1.msra.mxu0 %v213
    %246 = vmatprep.subr.mxu0 0.0
    %247 = vmatpush1.msra.mxu0 %v214
    %248 = vmatprep.subr.mxu0 0.0
    %249 = vmatpush1.msra.mxu0 %v215
    %250 = vmatprep.subr.mxu0 0.0
    %251 = vmatpush1.msra.mxu0 %v216
    %252 = vmatprep.subr.mxu0 0.0
    %253 = vmatpush1.msra.mxu0 %v217
    %254 = vmatprep.subr.mxu0 0.0
    %255 = vmatpush1.msra.mxu0 0.0
    %256 = vmatprep.subr.mxu0 0.0
    %257 = vmatpush1.msra.mxu0 0.0
    %258 = vmatprep.subr.mxu0 0.0
    %259 = vmatpush1.msra.mxu0 0.0
    %260 = vmatprep.subr.mxu0 0.0
    %261 = vmatpush1.msra.mxu0 0.0
    %262 = vmatprep.subr.mxu0 0.0
    %263 = vmatpush1.msra.mxu0 0.0
    %264 = vmatprep.subr.mxu0 0.0
    %265 = vmatpush1.msra.mxu0 0.0
    %266 = vmatprep.subr.mxu0 0.0
    %267 = vmatpush1.msra.mxu0 0.0
    %268 = vmatprep.subr.mxu0 0.0
    %269 = vmatpush1.msra.mxu0 0.0
    %270 = vmatprep.subr.mxu0 0.0
    %271 = vmatpush1.msra.mxu0 0.0
    %272 = vmatprep.subr.mxu0 0.0
    %273 = vmatpush1.msra.mxu0 0.0
    %274 = vmatprep.subr.mxu0 0.0
    %275 = vmatpush1.msra.mxu0 0.0
    %276 = vmatprep.subr.mxu0 0.0
    %277 = vmatpush1.msra.mxu0 0.0
    %278 = vmatprep.subr.mxu0 0.0
    %279 = vmatpush1.msra.mxu0 0.0
    %280 = vmatprep.subr.mxu0 0.0
    %281 = vmatpush1.msra.mxu0 0.0
    %282 = vmatprep.subr.mxu0 0.0
    %283 = vmatpush1.msra.mxu0 0.0
    %284 = vmatprep.subr.mxu0 0.0
    %285 = vmatpush1.msra.mxu0 0.0
    %286 = vmatprep.mubr.f32.mxu0 0.0
    %287 = vmatmul.mubr.f32.gmra.mrb[0].mxu0 %v201
    %v288 = vpop.f32.mrb[0].mxu0
    %v289 = vadd.f32 %v221, %v288
    %v290 = vpop.f32.mrb[0].mxu0
    %291 = vdwg.mxu0
    %v292 = vmax.f32 %v289, 0.0
    %v293 = vld [vmem:[#allocation2 + $0x1a8] sm:$0xff]
    %v294 = vld [vmem:[#allocation2 + $0x1b0] sm:$0xff]
    %v295 = vld [vmem:[#allocation2 + $0x1b8] sm:$0xff]
    %v296 = vld [vmem:[#allocation2 + $0x1c0] sm:$0xff]
    %v297 = vld [vmem:[#allocation2 + $0x1c8] sm:$0xff]
    %v298 = vld [vmem:[#allocation2 + $0x1d0] sm:$0xff]
    %v299 = vld [vmem:[#allocation2 + $0x1d8] sm:$0xff]
    %v300 = vld [vmem:[#allocation2 + $0x1e0] sm:$0xff]
    %v301 = vld [vmem:[#allocation2 + $0x1e8] sm:$0xff]
    %v302 = vld [vmem:[#allocation2 + $0x1f0] sm:$0xff]
    %v303 = vld [vmem:[#allocation2 + $0x1f8] sm:$0xff]
    %v304 = vld [vmem:[#allocation2 + $0x200] sm:$0xff]
    %v305 = vld [vmem:[#allocation2 + $0x208] sm:$0xff]
    %v306 = vld [vmem:[#allocation2 + $0x210] sm:$0xff]
    %v307 = vld [vmem:[#allocation2 + $0x218] sm:$0xff]
    %v308 = vld [vmem:[#allocation2 + $0x220] sm:$0xff]
    %v309 = vld [vmem:[#allocation2 + $0x128] sm:$0xff]
    %v310 = vld [vmem:[#allocation2 + $0x130] sm:$0xff]
    %v311 = vld [vmem:[#allocation2 + $0x138] sm:$0xff]
    %v312 = vld [vmem:[#allocation2 + $0x140] sm:$0xff]
    %v313 = vld [vmem:[#allocation2 + $0x148] sm:$0xff]
    %v314 = vld [vmem:[#allocation2 + $0x150] sm:$0xff]
    %v315 = vld [vmem:[#allocation2 + $0x158] sm:$0xff]
    %v316 = vld [vmem:[#allocation2 + $0x160] sm:$0xff]
    %v317 = vld [vmem:[#allocation2 + $0x168] sm:$0xff]
    %v318 = vld [vmem:[#allocation2 + $0x170] sm:$0xff]
    %v319 = vld [vmem:[#allocation2 + $0x178] sm:$0xff]
    %v320 = vld [vmem:[#allocation2 + $0x180] sm:$0xff]
    %v321 = vld [vmem:[#allocation2 + $0x188] sm:$0xff]
    %v322 = vld [vmem:[#allocation2 + $0x190] sm:$0xff]
    %v323 = vld [vmem:[#allocation2 + $0x198] sm:$0xff]
    %v324 = vld [vmem:[#allocation2 + $0x1a0] sm:$0xff]
    %v325 = vlaneseq
    %v326 = vshrl.u32 %v325, 7
    %v327 = vsub.s32 3, %v326
    %v328 = vrot.slane %v27, %v327
    %329 = vmatprep.subr.mxu0 0.0
    %330 = vmatpush1.msra.mxu0 %v309
    %331 = vmatprep.subr.mxu0 0.0
    %332 = vmatpush1.msra.mxu0 %v310
    %333 = vmatprep.subr.mxu0 0.0
    %334 = vmatpush1.msra.mxu0 %v311
    %335 = vmatprep.subr.mxu0 0.0
    %336 = vmatpush1.msra.mxu0 %v312
    %337 = vmatprep.subr.mxu0 0.0
    %338 = vmatpush1.msra.mxu0 %v313
    %339 = vmatprep.subr.mxu0 0.0
    %340 = vmatpush1.msra.mxu0 %v314
    %341 = vmatprep.subr.mxu0 0.0
    %342 = vmatpush1.msra.mxu0 %v315
    %343 = vmatprep.subr.mxu0 0.0
    %344 = vmatpush1.msra.mxu0 %v316
    %345 = vmatprep.subr.mxu0 0.0
    %346 = vmatpush1.msra.mxu0 %v317
    %347 = vmatprep.subr.mxu0 0.0
    %348 = vmatpush1.msra.mxu0 %v318
    %349 = vmatprep.subr.mxu0 0.0
    %350 = vmatpush1.msra.mxu0 %v319
    %351 = vmatprep.subr.mxu0 0.0
    %352 = vmatpush1.msra.mxu0 %v320
    %353 = vmatprep.subr.mxu0 0.0
    %354 = vmatpush1.msra.mxu0 %v321
    %355 = vmatprep.subr.mxu0 0.0
    %356 = vmatpush1.msra.mxu0 %v322
    %357 = vmatprep.subr.mxu0 0.0
    %358 = vmatpush1.msra.mxu0 %v323
    %359 = vmatprep.subr.mxu0 0.0
    %360 = vmatpush1.msra.mxu0 %v324
    %361 = vmatprep.subr.mxu0 0.0
    %362 = vmatpush1.msra.mxu0 0.0
    %363 = vmatprep.subr.mxu0 0.0
    %364 = vmatpush1.msra.mxu0 0.0
    %365 = vmatprep.subr.mxu0 0.0
    %366 = vmatpush1.msra.mxu0 0.0
    %367 = vmatprep.subr.mxu0 0.0
    %368 = vmatpush1.msra.mxu0 0.0
    %369 = vmatprep.subr.mxu0 0.0
    %370 = vmatpush1.msra.mxu0 0.0
    %371 = vmatprep.subr.mxu0 0.0
    %372 = vmatpush1.msra.mxu0 0.0
    %373 = vmatprep.subr.mxu0 0.0
    %374 = vmatpush1.msra.mxu0 0.0
    %375 = vmatprep.subr.mxu0 0.0
    %376 = vmatpush1.msra.mxu0 0.0
    %377 = vmatprep.subr.mxu0 0.0
    %378 = vmatpush1.msra.mxu0 0.0
    %379 = vmatprep.subr.mxu0 0.0
    %380 = vmatpush1.msra.mxu0 0.0
    %381 = vmatprep.subr.mxu0 0.0
    %382 = vmatpush1.msra.mxu0 0.0
    %383 = vmatprep.subr.mxu0 0.0
    %384 = vmatpush1.msra.mxu0 0.0
    %385 = vmatprep.subr.mxu0 0.0
    %386 = vmatpush1.msra.mxu0 0.0
    %387 = vmatprep.subr.mxu0 0.0
    %388 = vmatpush1.msra.mxu0 0.0
    %389 = vmatprep.subr.mxu0 0.0
    %390 = vmatpush1.msra.mxu0 0.0
    %391 = vmatprep.subr.mxu0 0.0
    %392 = vmatpush1.msra.mxu0 0.0
    %393 = vmatprep.mubr.f32.mxu0 0.0
    %394 = vmatmul.mubr.f32.gmra.mrb[0].mxu0 %v201
    %v395 = vpop.f32.mrb[0].mxu0
    %v396 = vadd.f32 %v328, %v395
    %v397 = vpop.f32.mrb[0].mxu0
    %398 = vdwg.mxu0
    %v399 = vmax.f32 %v396, 0.0
    %v400 = vld [vmem:[#allocation2 + $0x228] sm:$0xff]
    %v401 = vld [vmem:[#allocation2 + $0x230] sm:$0xff]
    %v402 = vld [vmem:[#allocation2 + $0x238] sm:$0xff]
    %v403 = vld [vmem:[#allocation2 + $0x240] sm:$0xff]
    %v404 = vld [vmem:[#allocation2 + $0x248] sm:$0xff]
    %v405 = vld [vmem:[#allocation2 + $0x250] sm:$0xff]
    %v406 = vld [vmem:[#allocation2 + $0x258] sm:$0xff]
    %v407 = vld [vmem:[#allocation2 + $0x260] sm:$0xff]
    %v408 = vld [vmem:[#allocation2 + $0x268] sm:$0xff]
    %v409 = vld [vmem:[#allocation2 + $0x270] sm:$0xff]
    %v410 = vld [vmem:[#allocation2 + $0x278] sm:$0xff]
    %v411 = vld [vmem:[#allocation2 + $0x280] sm:$0xff]
    %v412 = vld [vmem:[#allocation2 + $0x288] sm:$0xff]
    %v413 = vld [vmem:[#allocation2 + $0x290] sm:$0xff]
    %v414 = vld [vmem:[#allocation2 + $0x298] sm:$0xff]
    %v415 = vld [vmem:[#allocation2 + $0x2a0] sm:$0xff]
    %416 = vmatprep.subr.mxu0 0.0
    %417 = vmatpush1.msra.mxu0 %v400
    %418 = vmatprep.subr.mxu0 0.0
    %419 = vmatpush1.msra.mxu0 %v401
    %420 = vmatprep.subr.mxu0 0.0
    %421 = vmatpush1.msra.mxu0 %v402
    %422 = vmatprep.subr.mxu0 0.0
    %423 = vmatpush1.msra.mxu0 %v403
    %424 = vmatprep.subr.mxu0 0.0
    %425 = vmatpush1.msra.mxu0 %v404
    %426 = vmatprep.subr.mxu0 0.0
    %427 = vmatpush1.msra.mxu0 %v405
    %428 = vmatprep.subr.mxu0 0.0
    %429 = vmatpush1.msra.mxu0 %v406
    %430 = vmatprep.subr.mxu0 0.0
    %431 = vmatpush1.msra.mxu0 %v407
    %432 = vmatprep.subr.mxu0 0.0
    %433 = vmatpush1.msra.mxu0 %v408
    %434 = vmatprep.subr.mxu0 0.0
    %435 = vmatpush1.msra.mxu0 %v409
    %436 = vmatprep.subr.mxu0 0.0
    %437 = vmatpush1.msra.mxu0 %v410
    %438 = vmatprep.subr.mxu0 0.0
    %439 = vmatpush1.msra.mxu0 %v411
    %440 = vmatprep.subr.mxu0 0.0
    %441 = vmatpush1.msra.mxu0 %v412
    %442 = vmatprep.subr.mxu0 0.0
    %443 = vmatpush1.msra.mxu0 %v413
    %444 = vmatprep.subr.mxu0 0.0
    %445 = vmatpush1.msra.mxu0 %v414
    %446 = vmatprep.subr.mxu0 0.0
    %447 = vmatpush1.msra.mxu0 %v415
    %448 = vmatprep.subr.mxu0 0.0
    %449 = vmatpush1.msra.mxu0 0.0
    %450 = vmatprep.subr.mxu0 0.0
    %451 = vmatpush1.msra.mxu0 0.0
    %452 = vmatprep.subr.mxu0 0.0
    %453 = vmatpush1.msra.mxu0 0.0
    %454 = vmatprep.subr.mxu0 0.0
    %455 = vmatpush1.msra.mxu0 0.0
    %456 = vmatprep.subr.mxu0 0.0
    %457 = vmatpush1.msra.mxu0 0.0
    %458 = vmatprep.subr.mxu0 0.0
    %459 = vmatpush1.msra.mxu0 0.0
    %460 = vmatprep.subr.mxu0 0.0
    %461 = vmatpush1.msra.mxu0 0.0
    %462 = vmatprep.subr.mxu0 0.0
    %463 = vmatpush1.msra.mxu0 0.0
    %464 = vmatprep.subr.mxu0 0.0
    %465 = vmatpush1.msra.mxu0 0.0
    %466 = vmatprep.subr.mxu0 0.0
    %467 = vmatpush1.msra.mxu0 0.0
    %468 = vmatprep.subr.mxu0 0.0
    %469 = vmatpush1.msra.mxu0 0.0
    %470 = vmatprep.subr.mxu0 0.0
    %471 = vmatpush1.msra.mxu0 0.0
    %472 = vmatprep.subr.mxu0 0.0
    %473 = vmatpush1.msra.mxu0 0.0
    %474 = vmatprep.subr.mxu0 0.0
    %475 = vmatpush1.msra.mxu0 0.0
    %476 = vmatprep.subr.mxu0 0.0
    %477 = vmatpush1.msra.mxu0 0.0
    %478 = vmatprep.subr.mxu0 0.0
    %479 = vmatpush1.msra.mxu0 0.0
    %480 = vmatprep.mubr.f32.mxu0 0.0
    %481 = vmatmul.mubr.f32.gmra.mrb[0].mxu0 %v399
    %v482 = vpop.f32.mrb[0].mxu0
    %v483 = vadd.f32 0.0, %v482
    %v484 = vpop.f32.mrb[0].mxu0
    %485 = vdwg.mxu0
    %486 = vmatprep.subr.mxu0 0.0
    %487 = vmatpush1.msra.mxu0 %v293
    %488 = vmatprep.subr.mxu0 0.0
    %489 = vmatpush1.msra.mxu0 %v294
    %490 = vmatprep.subr.mxu0 0.0
    %491 = vmatpush1.msra.mxu0 %v295
    %492 = vmatprep.subr.mxu0 0.0
    %493 = vmatpush1.msra.mxu0 %v296
    %494 = vmatprep.subr.mxu0 0.0
    %495 = vmatpush1.msra.mxu0 %v297
    %496 = vmatprep.subr.mxu0 0.0
    %497 = vmatpush1.msra.mxu0 %v298
    %498 = vmatprep.subr.mxu0 0.0
    %499 = vmatpush1.msra.mxu0 %v299
    %500 = vmatprep.subr.mxu0 0.0
    %501 = vmatpush1.msra.mxu0 %v300
    %502 = vmatprep.subr.mxu0 0.0
    %503 = vmatpush1.msra.mxu0 %v301
    %504 = vmatprep.subr.mxu0 0.0
    %505 = vmatpush1.msra.mxu0 %v302
    %506 = vmatprep.subr.mxu0 0.0
    %507 = vmatpush1.msra.mxu0 %v303
    %508 = vmatprep.subr.mxu0 0.0
    %509 = vmatpush1.msra.mxu0 %v304
    %510 = vmatprep.subr.mxu0 0.0
    %511 = vmatpush1.msra.mxu0 %v305
    %512 = vmatprep.subr.mxu0 0.0
    %513 = vmatpush1.msra.mxu0 %v306
    %514 = vmatprep.subr.mxu0 0.0
    %515 = vmatpush1.msra.mxu0 %v307
    %516 = vmatprep.subr.mxu0 0.0
    %517 = vmatpush1.msra.mxu0 %v308
    %518 = vmatprep.subr.mxu0 0.0
    %519 = vmatpush1.msra.mxu0 0.0
    %520 = vmatprep.subr.mxu0 0.0
    %521 = vmatpush1.msra.mxu0 0.0
    %522 = vmatprep.subr.mxu0 0.0
    %523 = vmatpush1.msra.mxu0 0.0
    %524 = vmatprep.subr.mxu0 0.0
    %525 = vmatpush1.msra.mxu0 0.0
    %526 = vmatprep.subr.mxu0 0.0
    %527 = vmatpush1.msra.mxu0 0.0
    %528 = vmatprep.subr.mxu0 0.0
    %529 = vmatpush1.msra.mxu0 0.0
    %530 = vmatprep.subr.mxu0 0.0
    %531 = vmatpush1.msra.mxu0 0.0
    %532 = vmatprep.subr.mxu0 0.0
    %533 = vmatpush1.msra.mxu0 0.0
    %534 = vmatprep.subr.mxu0 0.0
    %535 = vmatpush1.msra.mxu0 0.0
    %536 = vmatprep.subr.mxu0 0.0
    %537 = vmatpush1.msra.mxu0 0.0
    %538 = vmatprep.subr.mxu0 0.0
    %539 = vmatpush1.msra.mxu0 0.0
    %540 = vmatprep.subr.mxu0 0.0
    %541 = vmatpush1.msra.mxu0 0.0
    %542 = vmatprep.subr.mxu0 0.0
    %543 = vmatpush1.msra.mxu0 0.0
    %544 = vmatprep.subr.mxu0 0.0
    %545 = vmatpush1.msra.mxu0 0.0
    %546 = vmatprep.subr.mxu0 0.0
    %547 = vmatpush1.msra.mxu0 0.0
    %548 = vmatprep.subr.mxu0 0.0
    %549 = vmatpush1.msra.mxu0 0.0
    %550 = vmatprep.mubr.f32.mxu0 0.0
    %551 = vmatmul.mubr.f32.gmra.mrb[0].mxu0 %v292
    %v552 = vpop.f32.mrb[0].mxu0
    %v553 = vadd.f32 %v483, %v552
    %v554 = vpop.f32.mrb[0].mxu0
    %555 = vdwg.mxu0
    %v556 = vlaneseq
    %v557 = vshrl.u32 %v556, 7
    %v558 = vsub.s32 4, %v557
    %v559 = vrot.slane %v27, %v558
    %v560 = vadd.f32 %v553, %v559
    %561 = vmax.xlane.f32.xlu0 %v560
    %v562 = vpop.xlane.xlu0 %561
    %v563 = vsub.f32 %v560, %v562
    %v564 = vmul.f32 %v563, 1.442695
    %v565 = vpow.pop %v564
    %v566 = vld [vmem:[#allocation2 + $0x2a8] sm:$0xff]
    %v567 = vld [vmem:[#allocation2 + $0x2b0] sm:$0xff]
    %v568 = vld [vmem:[#allocation2 + $0x2b8] sm:$0xff]
    %v569 = vld [vmem:[#allocation2 + $0x2c0] sm:$0xff]
    %v570 = vld [vmem:[#allocation2 + $0x2c8] sm:$0xff]
    %v571 = vld [vmem:[#allocation2 + $0x2d0] sm:$0xff]
    %v572 = vld [vmem:[#allocation2 + $0x2d8] sm:$0xff]
    %v573 = vld [vmem:[#allocation2 + $0x2e0] sm:$0xff]
    %v574 = vld [vmem:[#allocation2 + $0x2e8] sm:$0xff]
    %v575 = vld [vmem:[#allocation2 + $0x2f0] sm:$0xff]
    %v576 = vld [vmem:[#allocation2 + $0x2f8] sm:$0xff]
    %v577 = vld [vmem:[#allocation2 + $0x300] sm:$0xff]
    %v578 = vld [vmem:[#allocation2 + $0x308] sm:$0xff]
    %v579 = vld [vmem:[#allocation2 + $0x310] sm:$0xff]
    %v580 = vld [vmem:[#allocation2 + $0x318] sm:$0xff]
    %v581 = vld [vmem:[#allocation2 + $0x320] sm:$0xff]
    %582 = vmatprep.subr.mxu0 0.0
    %583 = vmatpush1.msra.mxu0 %v566
    %584 = vmatprep.subr.mxu0 0.0
    %585 = vmatpush1.msra.mxu0 %v567
    %586 = vmatprep.subr.mxu0 0.0
    %587 = vmatpush1.msra.mxu0 %v568
    %588 = vmatprep.subr.mxu0 0.0
    %589 = vmatpush1.msra.mxu0 %v569
    %590 = vmatprep.subr.mxu0 0.0
    %591 = vmatpush1.msra.mxu0 %v570
    %592 = vmatprep.subr.mxu0 0.0
    %593 = vmatpush1.msra.mxu0 %v571
    %594 = vmatprep.subr.mxu0 0.0
    %595 = vmatpush1.msra.mxu0 %v572
    %596 = vmatprep.subr.mxu0 0.0
    %597 = vmatpush1.msra.mxu0 %v573
    %598 = vmatprep.subr.mxu0 0.0
    %599 = vmatpush1.msra.mxu0 %v574
    %600 = vmatprep.subr.mxu0 0.0
    %601 = vmatpush1.msra.mxu0 %v575
    %602 = vmatprep.subr.mxu0 0.0
    %603 = vmatpush1.msra.mxu0 %v576
    %604 = vmatprep.subr.mxu0 0.0
    %605 = vmatpush1.msra.mxu0 %v577
    %606 = vmatprep.subr.mxu0 0.0
    %607 = vmatpush1.msra.mxu0 %v578
    %608 = vmatprep.subr.mxu0 0.0
    %609 = vmatpush1.msra.mxu0 %v579
    %610 = vmatprep.subr.mxu0 0.0
    %611 = vmatpush1.msra.mxu0 %v580
    %612 = vmatprep.subr.mxu0 0.0
    %613 = vmatpush1.msra.mxu0 %v581
    %614 = vmatprep.subr.mxu0 0.0
    %615 = vmatpush1.msra.mxu0 0.0
    %616 = vmatprep.subr.mxu0 0.0
    %617 = vmatpush1.msra.mxu0 0.0
    %618 = vmatprep.subr.mxu0 0.0
    %619 = vmatpush1.msra.mxu0 0.0
    %620 = vmatprep.subr.mxu0 0.0
    %621 = vmatpush1.msra.mxu0 0.0
    %622 = vmatprep.subr.mxu0 0.0
    %623 = vmatpush1.msra.mxu0 0.0
    %624 = vmatprep.subr.mxu0 0.0
    %625 = vmatpush1.msra.mxu0 0.0
    %626 = vmatprep.subr.mxu0 0.0
    %627 = vmatpush1.msra.mxu0 0.0
    %628 = vmatprep.subr.mxu0 0.0
    %629 = vmatpush1.msra.mxu0 0.0
    %630 = vmatprep.subr.mxu0 0.0
    %631 = vmatpush1.msra.mxu0 0.0
    %632 = vmatprep.subr.mxu0 0.0
    %633 = vmatpush1.msra.mxu0 0.0
    %634 = vmatprep.subr.mxu0 0.0
    %635 = vmatpush1.msra.mxu0 0.0
    %636 = vmatprep.subr.mxu0 0.0
    %637 = vmatpush1.msra.mxu0 0.0
    %638 = vmatprep.subr.mxu0 0.0
    %639 = vmatpush1.msra.mxu0 0.0
    %640 = vmatprep.subr.mxu0 0.0
    %641 = vmatpush1.msra.mxu0 0.0
    %642 = vmatprep.subr.mxu0 0.0
    %643 = vmatpush1.msra.mxu0 0.0
    %644 = vmatprep.subr.mxu0 0.0
    %645 = vmatpush1.msra.mxu0 0.0
    %646 = vmatprep.mubr.f32.mxu0 0.0
    %647 = vmatmul.mubr.f32.gmra.mrb[0].mxu0 %v565
    %v648 = vpop.f32.mrb[0].mxu0
    %v649 = vadd.f32 0.0, %v648
    %v650 = vpop.f32.mrb[0].mxu0
    %651 = vdwg.mxu0
    %v652 = vrcp.pop %v649
    %v653 = vmul.f32 %v565, %v652
    %654 = vst [vmem:[#allocation5] sm:$0xff] %v653
    // Predicated region
    $region14: #{actor_forward.1} parent=1 // pred_check
      _
    $region15: #{actor_forward.1} parent=1 // pred_check_branch
      %656 = sbr.rel (0) target = $region17
    $region16: #{actor_forward.1} parent=1 // pred_region
      %s658 = ssub.s32 128, 128
      %659 = vsyncadd [#allocation4], %s658
      %s661 = sshll.u32 [#allocation5], 4
      %s662 = int_to_ptr.vmem [resolvable:$true] %s661
      %664 = dma.vmem_to_hbm [thread:$0]  %s662, 128, %s2, [#allocation4]
    $region17: #{actor_forward.1} parent=1 // pred_fallthru
      _
    // Predicated region
    $region18: #{actor_forward.1} parent=1 // pred_check
      _
    $region19: #{actor_forward.1} parent=1 // pred_check_branch
      %666 = sbr.rel (0) target = $region21
    $region20: #{actor_forward.1} parent=1 // pred_region
      %667 = dma.done [#allocation4], 128
    $region21: #{actor_forward.1} parent=1 // pred_fallthru
      _
    %668 = vsyncpa [#allocation3], 1
    %669 = vsyncpa [#allocation4], 1

</llo_original>
